<compile_context>
chip_gen: v7x
topology: tpu7x:2x2x1
jax: 0.10.0
libtpu: 0.0.40
codegen_flags: <defaults>
</compile_context>

<pallas_src>
import jax
import jax.numpy as jnp
from jax.experimental import pallas as pl
from jax.experimental.pallas import tpu as pltpu


# --------------------------------------------------------------------------
# Fused GCN kernel:  swish( (Wc_blkdiag @ X_rows) @ Wl^T + bias_eff )
# --------------------------------------------------------------------------
def _gcn_kernel(x_ref, wc_ref, wl_ref, bias_ref, o_ref):
    """Fused GCN forward (eval mode).

    x_ref   : (B*n_in,  d_in)    input, rows ordered (b, i)  -- free view of x
    wc_ref  : (B*n_out, B*n_in)  block-diagonal Conv1d(kernel=1) weight
    wl_ref  : (d_in,    d_out)   Linear weight, pre-transposed
    bias_ref: (B*n_out, d_out)   fused bias: conv_b folded through Wl + linear_b
    o_ref   : (B*n_out, d_out)   rows ordered (b, o)
    """
    # 1x1 Conv1d over n_in for ALL batches at once (one MXU matmul); rows of h
    # come out directly in (b, o) order -> no relayout between the matmuls.
    h = jnp.dot(wc_ref[...], x_ref[...], preferred_element_type=jnp.float32)

    # Linear over d_in for all (b, o) rows (second MXU matmul) + fused bias.
    z = jnp.dot(h, wl_ref[...], preferred_element_type=jnp.float32)
    z = z + bias_ref[...]

    # Dropout = identity (inference mode); Swish activation (sigmoid -> EUP).
    o_ref[...] = (z * jax.nn.sigmoid(z)).astype(o_ref.dtype)


def gcn_forward(x, conv_w, conv_b, linear_w, linear_b):
    """GCN.forward in eval mode.

    x:        (B, n_in, d_in)
    conv_w:   (n_out, n_in)   -- torch Conv1d weight with kernel dim squeezed
    conv_b:   (n_out,)
    linear_w: (d_out, d_in)   -- torch Linear weight (out_features, in_features)
    linear_b: (d_out,)
    returns:  (B, n_out, d_out)
    """
    B, n_in, d_in = x.shape
    n_out = conv_w.shape[0]
    d_out = linear_w.shape[0]

    f32 = jnp.float32
    x_rows = x.astype(f32).reshape(B * n_in, d_in)            # free view, no transpose

    # Block-diagonal conv weight: B copies of conv_w on the diagonal.
    wc_blk = jnp.kron(jnp.eye(B, dtype=f32), conv_w.astype(f32))   # (B*n_out, B*n_in)

    # Pre-transposed linear weight.
    wl = jnp.transpose(linear_w).astype(f32)                  # (d_in, d_out)

    # Fold the conv bias through the linear:
    #   z[b,o,e] = sum_d h_conv[b,o,d]*wl[d,e] + conv_b[o]*sum_d wl[d,e] + linear_b[e]
    bias_eff = (conv_b.astype(f32)[:, None] * jnp.sum(wl, axis=0)[None, :]
                + linear_b.astype(f32)[None, :])              # (n_out, d_out)
    bias_full = jnp.tile(bias_eff, (B, 1))                    # (B*n_out, d_out)

    out = pl.pallas_call(
        _gcn_kernel,
        out_shape=jax.ShapeDtypeStruct((B * n_out, d_out), f32),
        in_specs=[pl.BlockSpec(memory_space=pltpu.MemorySpace.VMEM)] * 4,
        out_specs=pl.BlockSpec(memory_space=pltpu.MemorySpace.VMEM),
    )(x_rows, wc_blk, wl, bias_full)

    # Rows are already (b, o)-ordered: a plain (free) reshape, no transpose.
    return out.reshape(B, n_out, d_out)


# --------------------------------------------------------------------------
# Pure-JAX reference (mirrors the PyTorch module, eval mode)
# --------------------------------------------------------------------------
def gcn_reference(x, conv_w, conv_b, linear_w, linear_b):
    h = jnp.einsum("oi,bid->bod", conv_w, x) + conv_b.reshape(1, -1, 1)
    z = jnp.einsum("bod,ed->boe", h, linear_w) + linear_b.reshape(1, 1, -1)
    return z * jax.nn.sigmoid(z)          # Swish (dropout = identity in eval)


# --------------------------------------------------------------------------
if __name__ == "__main__":
    key = jax.random.PRNGKey(0)
    kx, kwc, kbc, kwl, kbl = jax.random.split(key, 5)

    # Shapes matching the PREN-FPN usage of GCN:
    #   GCN(d_in=d_model, n_in=n_r, d_out=d_model, n_out=max_len)
    B, n_in, d_in = 2, 4, 48          # x: (batch, n_r, d_model)
    n_out, d_out = 8, 48              # (max_len, d_model)

    x = jax.random.normal(kx, (B, n_in, d_in), jnp.float32)
    conv_w = 0.1 * jax.random.normal(kwc, (n_out, n_in), jnp.float32)
    conv_b = 0.1 * jax.random.normal(kbc, (n_out,), jnp.float32)
    linear_w = 0.1 * jax.random.normal(kwl, (d_out, d_in), jnp.float32)
    linear_b = 0.1 * jax.random.normal(kbl, (d_out,), jnp.float32)

    y = gcn_forward(x, conv_w, conv_b, linear_w, linear_b)
    y = jax.block_until_ready(y)

    y_ref = gcn_reference(x, conv_w, conv_b, linear_w, linear_b)

    assert y.shape == (B, n_out, d_out), y.shape
    assert jnp.all(jnp.isfinite(y))
    assert jnp.allclose(y, y_ref, rtol=1e-5, atol=1e-5), float(
        jnp.max(jnp.abs(y - y_ref)))
    print("KERNEL_OK")
</pallas_src>

<mosaic_0001>
module attributes {stable_mosaic.version = 11 : i64} {
  func.func @_gcn_kernel(%arg0: memref<8x48xf32, #tpu.memory_space<vmem>>, %arg1: memref<16x8xf32, #tpu.memory_space<vmem>>, %arg2: memref<48x48xf32, #tpu.memory_space<vmem>>, %arg3: memref<16x48xf32, #tpu.memory_space<vmem>>, %arg4: memref<16x48xf32, #tpu.memory_space<vmem>>) attributes {dimension_semantics = [], scalar_prefetch = 0 : i64, scratch_operands = 0 : i64, tpu.core_type = #tpu.core_type<tc>} {
    %c0 = arith.constant 0 : index
    %c0_0 = arith.constant 0 : index
    %0 = vector.load %arg1[%c0, %c0_0] : memref<16x8xf32, #tpu.memory_space<vmem>>, vector<16x8xf32>
    %c0_1 = arith.constant 0 : index
    %c0_2 = arith.constant 0 : index
    %1 = vector.load %arg0[%c0_1, %c0_2] : memref<8x48xf32, #tpu.memory_space<vmem>>, vector<8x48xf32>
    %cst = arith.constant dense<0.000000e+00> : vector<16x48xf32>
    %2 = tpu.matmul %0, %1, %cst {dimension_numbers = #tpu.dot_dimension_numbers<[1], [0], [0], [1], [0, 0, 1, 1], [], []>} : vector<16x8xf32>, vector<8x48xf32>, vector<16x48xf32> -> vector<16x48xf32>
    %c0_3 = arith.constant 0 : index
    %c0_4 = arith.constant 0 : index
    %3 = vector.load %arg2[%c0_3, %c0_4] : memref<48x48xf32, #tpu.memory_space<vmem>>, vector<48x48xf32>
    %cst_5 = arith.constant dense<0.000000e+00> : vector<16x48xf32>
    %4 = tpu.matmul %2, %3, %cst_5 {dimension_numbers = #tpu.dot_dimension_numbers<[1], [0], [0], [1], [0, 0, 1, 1], [], []>} : vector<16x48xf32>, vector<48x48xf32>, vector<16x48xf32> -> vector<16x48xf32>
    %c0_6 = arith.constant 0 : index
    %c0_7 = arith.constant 0 : index
    %5 = vector.load %arg3[%c0_6, %c0_7] : memref<16x48xf32, #tpu.memory_space<vmem>>, vector<16x48xf32>
    %6 = arith.addf %4, %5 : vector<16x48xf32>
    %7 = arith.negf %6 : vector<16x48xf32>
    %8 = math.exp %7 : vector<16x48xf32>
    %cst_8 = arith.constant 1.000000e+00 : f32
    %9 = vector.broadcast %cst_8 : f32 to vector<16x48xf32>
    %10 = arith.addf %9, %8 : vector<16x48xf32>
    %11 = arith.divf %9, %10 : vector<16x48xf32>
    %12 = arith.mulf %6, %11 : vector<16x48xf32>
    %c0_9 = arith.constant 0 : index
    %c0_10 = arith.constant 0 : index
    %13 = vector.load %arg4[%c0_9, %c0_10] : memref<16x48xf32, #tpu.memory_space<vmem>>, vector<16x48xf32>
    tpu.vector_store %arg4[%c0_9, %c0_10], %12 {strides = array<i32>} : memref<16x48xf32, #tpu.memory_space<vmem>>, vector<16x48xf32>,
    return
  }
}

</mosaic_0001>

<llo_original>
// kernel: tpu_custom_call.1
$region0: #{tpu_custom_call.1}
  #allocation0 [shape = 'u32[]', space=smem, size = 0x4, offset = 0x4, fixed_abs, tag = 'smem constant byte address 0x4 - core index']
  #allocation1 [shape = 'u32[144,128]{1,0:T(1,128)}', space=vmem, size = 0x12000, scoped, tag = 'internal scratch']
  %s0 = inlined_call_operand.vmem [shape: f32[8,48], index: 0, kind: input, shape index: {}]
  %s1 = inlined_call_operand.vmem [shape: f32[16,8], index: 1, kind: input, shape index: {}]
  %s2 = inlined_call_operand.hbm [shape: f32[48,48], index: 2, kind: input, shape index: {}]
  %s3 = inlined_call_operand.vmem [shape: f32[16,48], index: 3, kind: input, shape index: {}]
  %s4 = inlined_call_operand.hbm [shape: f32[16,48], index: 4, kind: output, shape index: {}]
  %s5 = sld [smem:[#allocation0]]
  $region30: #{tpu_custom_call.1} parent=0
    _
  %s7 = ssub.s32 1, %s5
  %s8 = scalar_select 0, %s7, %s5
  $region1: #{tpu_custom_call.1} parent=0
    #allocation2 [shape = 'u8[24576]{0}', space=vmem, size = 0x6000, scoped, tag = 'input window, operand 2, single buffered']
    #allocation3 [shape = 's32[1]{0}', space=sflag, size = 0x4, scoped, tag = 'scoped memory for tpu_custom_call.1']
    #allocation4 [shape = 's32[1]{0}', space=sflag, size = 0x4, scoped, tag = 'scoped memory for tpu_custom_call.1']
    #allocation5 [shape = 'u8[8192]{0}', space=vmem, size = 0x2000, scoped, tag = 'output window, operand 0, single buffered']
    %9 = vsyncpa [#allocation3], 0
    %10 = vsyncpa [#allocation4], 0
    // Predicated region
    $region2: #{tpu_custom_call.1} parent=1 // pred_check
      _
    $region3: #{tpu_custom_call.1} parent=1 // pred_check_branch
      %12 = sbr.rel (0) target = $region5
    $region4: #{tpu_custom_call.1} parent=1 // pred_region
      _
    $region5: #{tpu_custom_call.1} parent=1 // pred_fallthru
      _
    // Predicated region
    $region6: #{tpu_custom_call.1} parent=1 // pred_check
      _
    $region7: #{tpu_custom_call.1} parent=1 // pred_check_branch
      %14 = sbr.rel (0) target = $region9
    $region8: #{tpu_custom_call.1} parent=1 // pred_region
      _
    $region9: #{tpu_custom_call.1} parent=1 // pred_fallthru
      _
    // Predicated region
    $region10: #{tpu_custom_call.1} parent=1 // pred_check
      _
    $region11: #{tpu_custom_call.1} parent=1 // pred_check_branch
      %16 = sbr.rel (0) target = $region13
    $region12: #{tpu_custom_call.1} parent=1 // pred_region
      %s18 = ssub.s32 768, 768
      %19 = vsyncadd [#allocation3], %s18
      %s20 = sshll.u32 [#allocation2], 4
      %s21 = int_to_ptr.vmem [resolvable:$true] %s20
      %26 = dma.hbm_to_vmem [thread:$0]  %s2, 768, %s21, [#allocation3], 128, 128, 8
    $region13: #{tpu_custom_call.1} parent=1 // pred_fallthru
      _
    // Predicated region
    $region14: #{tpu_custom_call.1} parent=1 // pred_check
      _
    $region15: #{tpu_custom_call.1} parent=1 // pred_check_branch
      %28 = sbr.rel (0) target = $region17
    $region16: #{tpu_custom_call.1} parent=1 // pred_region
      _
    $region17: #{tpu_custom_call.1} parent=1 // pred_fallthru
      _
    // Predicated region
    $region18: #{tpu_custom_call.1} parent=1 // pred_check
      _
    $region19: #{tpu_custom_call.1} parent=1 // pred_check_branch
      %30 = sbr.rel (0) target = $region21
    $region20: #{tpu_custom_call.1} parent=1 // pred_region
      %31 = dma.done [#allocation3], 768
    $region21: #{tpu_custom_call.1} parent=1 // pred_fallthru
      _
    %v32 = vld [vmem:[%s1] sm:$0xff]
    %v33 = vld [vmem:[%s1 + $0x8] sm:$0xff]
    %v34 = vld [vmem:[%s0] sm:$0xff]
    %vm35 = vcmask 64512
    %v37 = vsel %vm35, %v32, 0
    %v40 = vsel %vm35, %v33, 0
    %42 = vmatprep.subr.mxu0 0.0
    %43 = vmatpush1.msra.mxu0 %v34
    %44 = vmatprep.subr.mxu0 0.0
    %45 = vmatpush1.msra.mxu0 0.0
    %46 = vmatprep.subr.mxu0 0.0
    %47 = vmatpush1.msra.mxu0 0.0
    %48 = vmatprep.subr.mxu0 0.0
    %49 = vmatpush1.msra.mxu0 0.0
    %50 = vmatprep.subr.mxu0 0.0
    %51 = vmatpush1.msra.mxu0 0.0
    %52 = vmatprep.subr.mxu0 0.0
    %53 = vmatpush1.msra.mxu0 0.0
    %54 = vmatprep.subr.mxu0 0.0
    %55 = vmatpush1.msra.mxu0 0.0
    %56 = vmatprep.subr.mxu0 0.0
    %57 = vmatpush1.msra.mxu0 0.0
    %58 = vmatprep.subr.mxu0 0.0
    %59 = vmatpush1.msra.mxu0 0.0
    %60 = vmatprep.subr.mxu0 0.0
    %61 = vmatpush1.msra.mxu0 0.0
    %62 = vmatprep.subr.mxu0 0.0
    %63 = vmatpush1.msra.mxu0 0.0
    %64 = vmatprep.subr.mxu0 0.0
    %65 = vmatpush1.msra.mxu0 0.0
    %66 = vmatprep.subr.mxu0 0.0
    %67 = vmatpush1.msra.mxu0 0.0
    %68 = vmatprep.subr.mxu0 0.0
    %69 = vmatpush1.msra.mxu0 0.0
    %70 = vmatprep.subr.mxu0 0.0
    %71 = vmatpush1.msra.mxu0 0.0
    %72 = vmatprep.subr.mxu0 0.0
    %73 = vmatpush1.msra.mxu0 0.0
    %74 = vmatprep.subr.mxu0 0.0
    %75 = vmatpush1.msra.mxu0 0.0
    %76 = vmatprep.subr.mxu0 0.0
    %77 = vmatpush1.msra.mxu0 0.0
    %78 = vmatprep.subr.mxu0 0.0
    %79 = vmatpush1.msra.mxu0 0.0
    %80 = vmatprep.subr.mxu0 0.0
    %81 = vmatpush1.msra.mxu0 0.0
    %82 = vmatprep.subr.mxu0 0.0
    %83 = vmatpush1.msra.mxu0 0.0
    %84 = vmatprep.subr.mxu0 0.0
    %85 = vmatpush1.msra.mxu0 0.0
    %86 = vmatprep.subr.mxu0 0.0
    %87 = vmatpush1.msra.mxu0 0.0
    %88 = vmatprep.subr.mxu0 0.0
    %89 = vmatpush1.msra.mxu0 0.0
    %90 = vmatprep.subr.mxu0 0.0
    %91 = vmatpush1.msra.mxu0 0.0
    %92 = vmatprep.subr.mxu0 0.0
    %93 = vmatpush1.msra.mxu0 0.0
    %94 = vmatprep.subr.mxu0 0.0
    %95 = vmatpush1.msra.mxu0 0.0
    %96 = vmatprep.subr.mxu0 0.0
    %97 = vmatpush1.msra.mxu0 0.0
    %98 = vmatprep.subr.mxu0 0.0
    %99 = vmatpush1.msra.mxu0 0.0
    %100 = vmatprep.subr.mxu0 0.0
    %101 = vmatpush1.msra.mxu0 0.0
    %102 = vmatprep.subr.mxu0 0.0
    %103 = vmatpush1.msra.mxu0 0.0
    %104 = vmatprep.subr.mxu0 0.0
    %105 = vmatpush1.msra.mxu0 0.0
    %106 = vmatprep.mubr.f32.mxu0 0.0
    %107 = vmatmul.mubr.f32.gmra.mrb[0].mxu0 %v37
    %v108 = vpop.f32.mrb[0].mxu0
    %v109 = vadd.f32 0.0, %v108
    %v110 = vpop.f32.mrb[0].mxu0
    %111 = vmatprep.mubr.f32.mxu0 0.0
    %112 = vmatmul.mubr.f32.gmra.mrb[0].mxu0 %v40
    %v113 = vpop.f32.mrb[0].mxu0
    %v114 = vadd.f32 0.0, %v113
    %v115 = vpop.f32.mrb[0].mxu0
    %116 = vdwg.mxu0
    %v117 = vld [vmem:[#allocation2] sm:$0xff]
    %v118 = vld [vmem:[#allocation2 + $0x8] sm:$0xff]
    %v119 = vld [vmem:[#allocation2 + $0x10] sm:$0xff]
    %v120 = vld [vmem:[#allocation2 + $0x18] sm:$0xff]
    %v121 = vld [vmem:[#allocation2 + $0x20] sm:$0xff]
    %v122 = vld [vmem:[#allocation2 + $0x28] sm:$0xff]
    %v123 = vld [vmem:[%s3] sm:$0xff]
    %v124 = vld [vmem:[%s3 + $0x8] sm:$0xff]
    %vm125 = vcmask 392192
    %v127 = vsel %vm125, %v109, 0
    %v130 = vsel %vm125, %v114, 0
    %132 = vmatprep.subr.mxu0 0.0
    %133 = vmatpush1.msra.mxu0 %v117
    %134 = vmatprep.subr.mxu0 0.0
    %135 = vmatpush1.msra.mxu0 %v118
    %136 = vmatprep.subr.mxu0 0.0
    %137 = vmatpush1.msra.mxu0 %v119
    %138 = vmatprep.subr.mxu0 0.0
    %139 = vmatpush1.msra.mxu0 %v120
    %140 = vmatprep.subr.mxu0 0.0
    %141 = vmatpush1.msra.mxu0 %v121
    %142 = vmatprep.subr.mxu0 0.0
    %143 = vmatpush1.msra.mxu0 %v122
    %144 = vmatprep.subr.mxu0 0.0
    %145 = vmatpush1.msra.mxu0 0.0
    %146 = vmatprep.subr.mxu0 0.0
    %147 = vmatpush1.msra.mxu0 0.0
    %148 = vmatprep.subr.mxu0 0.0
    %149 = vmatpush1.msra.mxu0 0.0
    %150 = vmatprep.subr.mxu0 0.0
    %151 = vmatpush1.msra.mxu0 0.0
    %152 = vmatprep.subr.mxu0 0.0
    %153 = vmatpush1.msra.mxu0 0.0
    %154 = vmatprep.subr.mxu0 0.0
    %155 = vmatpush1.msra.mxu0 0.0
    %156 = vmatprep.subr.mxu0 0.0
    %157 = vmatpush1.msra.mxu0 0.0
    %158 = vmatprep.subr.mxu0 0.0
    %159 = vmatpush1.msra.mxu0 0.0
    %160 = vmatprep.subr.mxu0 0.0
    %161 = vmatpush1.msra.mxu0 0.0
    %162 = vmatprep.subr.mxu0 0.0
    %163 = vmatpush1.msra.mxu0 0.0
    %164 = vmatprep.subr.mxu0 0.0
    %165 = vmatpush1.msra.mxu0 0.0
    %166 = vmatprep.subr.mxu0 0.0
    %167 = vmatpush1.msra.mxu0 0.0
    %168 = vmatprep.subr.mxu0 0.0
    %169 = vmatpush1.msra.mxu0 0.0
    %170 = vmatprep.subr.mxu0 0.0
    %171 = vmatpush1.msra.mxu0 0.0
    %172 = vmatprep.subr.mxu0 0.0
    %173 = vmatpush1.msra.mxu0 0.0
    %174 = vmatprep.subr.mxu0 0.0
    %175 = vmatpush1.msra.mxu0 0.0
    %176 = vmatprep.subr.mxu0 0.0
    %177 = vmatpush1.msra.mxu0 0.0
    %178 = vmatprep.subr.mxu0 0.0
    %179 = vmatpush1.msra.mxu0 0.0
    %180 = vmatprep.subr.mxu0 0.0
    %181 = vmatpush1.msra.mxu0 0.0
    %182 = vmatprep.subr.mxu0 0.0
    %183 = vmatpush1.msra.mxu0 0.0
    %184 = vmatprep.subr.mxu0 0.0
    %185 = vmatpush1.msra.mxu0 0.0
    %186 = vmatprep.subr.mxu0 0.0
    %187 = vmatpush1.msra.mxu0 0.0
    %188 = vmatprep.subr.mxu0 0.0
    %189 = vmatpush1.msra.mxu0 0.0
    %190 = vmatprep.subr.mxu0 0.0
    %191 = vmatpush1.msra.mxu0 0.0
    %192 = vmatprep.subr.mxu0 0.0
    %193 = vmatpush1.msra.mxu0 0.0
    %194 = vmatprep.subr.mxu0 0.0
    %195 = vmatpush1.msra.mxu0 0.0
    %196 = vmatprep.mubr.f32.mxu0 0.0
    %197 = vmatmul.mubr.f32.gmra.mrb[0].mxu0 %v127
    %v198 = vpop.f32.mrb[0].mxu0
    %v199 = vadd.f32 %v123, %v198
    %v200 = vpop.f32.mrb[0].mxu0
    %201 = vmatprep.mubr.f32.mxu0 0.0
    %202 = vmatmul.mubr.f32.gmra.mrb[0].mxu0 %v130
    %v203 = vpop.f32.mrb[0].mxu0
    %v204 = vadd.f32 %v124, %v203
    %v205 = vpop.f32.mrb[0].mxu0
    %206 = vdwg.mxu0
    %v207 = vxor.u32 %v199, 2147483648
    %v208 = vxor.u32 %v204, 2147483648
    %v209 = vmul.f32 %v207, 1.442695
    %v210 = vpow.pop %v209
    %v211 = vmul.f32 %v208, 1.442695
    %v212 = vpow.pop %v211
    %v213 = vadd.f32 %v210, 1.0
    %v214 = vadd.f32 %v212, 1.0
    %v215 = vrcp.pop %v213
    %v216 = vmul.f32 1.0, %v215
    %v217 = vrcp.pop %v214
    %v218 = vmul.f32 1.0, %v217
    %v219 = vmul.f32 %v199, %v216
    %v220 = vmul.f32 %v204, %v218
    %221 = vst.msk [vmem:[#allocation5] sm:$0xff] %vm125, %v219
    %222 = vst.msk [vmem:[#allocation5 + $0x8] sm:$0xff] %vm125, %v220
    // Predicated region
    $region22: #{tpu_custom_call.1} parent=1 // pred_check
      _
    $region23: #{tpu_custom_call.1} parent=1 // pred_check_branch
      %224 = sbr.rel (0) target = $region25
    $region24: #{tpu_custom_call.1} parent=1 // pred_region
      %s226 = ssub.s32 256, 256
      %227 = vsyncadd [#allocation4], %s226
      %s228 = sshll.u32 [#allocation5], 4
      %s229 = int_to_ptr.vmem [resolvable:$true] %s228
      %234 = dma.vmem_to_hbm [thread:$0]  %s229, 256, %s4, [#allocation4], 128, 128, 8
    $region25: #{tpu_custom_call.1} parent=1 // pred_fallthru
      _
    // Predicated region
    $region26: #{tpu_custom_call.1} parent=1 // pred_check
      _
    $region27: #{tpu_custom_call.1} parent=1 // pred_check_branch
      %236 = sbr.rel (0) target = $region29
    $region28: #{tpu_custom_call.1} parent=1 // pred_region
      %237 = dma.done [#allocation4], 256
    $region29: #{tpu_custom_call.1} parent=1 // pred_fallthru
      _
    %238 = vsyncpa [#allocation3], 1
    %239 = vsyncpa [#allocation4], 1

</llo_original>
